<compile_context>
chip_gen: v7x
topology: tpu7x:2x2x1
jax: 0.10.0
libtpu: 0.0.40
codegen_flags: <defaults>
</compile_context>

<pallas_src>
import functools

import jax
import jax.numpy as jnp
from jax.experimental import pallas as pl
from jax.experimental.pallas import tpu as pltpu


def _round_up(n, m):
    return ((n + m - 1) // m) * m


def _discriminator_kernel(x_ref, w1_ref, b1_ref, w2_ref, b2_ref, w3_ref, b3_ref, o_ref):
    # x_ref : (BT, Dp)  compute dtype (bf16 by default)
    # w1_ref: (Dp, 128) compute dtype   b1_ref: (1, 128) f32
    # w2_ref: (128, 64) compute dtype   b2_ref: (1, 64)  f32
    # w3_ref: (1, 64)   f32             b3_ref: (1, 1)   f32
    # o_ref : (BT, 128) f32 (probability broadcast across lanes; column 0 is the answer)

    # Layer 1: MXU matmul with f32 accumulation; bias + ReLU on the VPU.
    h1 = jnp.dot(x_ref[...], w1_ref[...], preferred_element_type=jnp.float32)
    h1 = jnp.maximum(h1 + b1_ref[...], 0.0)                      # (BT, 128) f32

    # Layer 2: MXU matmul (activations cast to the matmul dtype), f32 accumulation.
    h2 = jnp.dot(h1.astype(w2_ref.dtype), w2_ref[...],
                 preferred_element_type=jnp.float32)
    h2 = jnp.maximum(h2 + b2_ref[...], 0.0)                      # (BT, 64) f32

    # Layer 3 (N=1): avoid a 1-column MXU matmul -> VPU multiply + XLU lane reduce.
    logit = jnp.sum(h2 * w3_ref[...], axis=-1, keepdims=True) + b3_ref[...]  # (BT, 1)

    # Sigmoid: saturation-safe clip, exp on the EUP, approx reciprocal on the EUP,
    # one Newton step on the VPU to recover full f32 precision.
    z = jnp.clip(logit, -30.0, 30.0)
    d = 1.0 + jnp.exp(-z)
    r = pl.reciprocal(d, approx=True)
    r = r * (2.0 - d * r)

    # Lane-dense store: broadcast the (BT, 1) column across all 128 lanes.
    o_ref[...] = jnp.broadcast_to(r, o_ref.shape)


def discriminator_forward(x, params, *, b_tile=256, compute_dtype=jnp.bfloat16):
    """Fused, batch-tiled forward pass. x: (B, input_dim) f32 -> (B, 1) f32."""
    B, D = x.shape
    w1, b1 = params["w1"], params["b1"]
    w2, b2 = params["w2"], params["b2"]
    w3, b3 = params["w3"], params["b3"]

    # --- K padding: full 128-lane vregs / full MXU contraction depth (exact). ---
    d_pad = _round_up(max(D, 128), 128)
    if d_pad != D:
        x = jnp.pad(x, ((0, 0), (0, d_pad - D)))
        w1 = jnp.pad(w1, ((0, d_pad - D), (0, 0)))

    # --- Batch tiling: sublane-aligned tile (16 covers bf16 packing), pad B up. ---
    sub = 16 if jnp.dtype(compute_dtype).itemsize < 4 else 8
    bt = min(_round_up(b_tile, sub), _round_up(B, sub))
    b_pad = _round_up(B, bt)
    if b_pad != B:
        x = jnp.pad(x, ((0, b_pad - B), (0, 0)))
    n_tiles = b_pad // bt

    # Dtype policy: matmul operands in compute_dtype, everything else f32.
    x_c = x.astype(compute_dtype)
    w1_c = w1.astype(compute_dtype)
    w2_c = w2.astype(compute_dtype)
    b1_f = b1.astype(jnp.float32).reshape(1, -1)
    b2_f = b2.astype(jnp.float32).reshape(1, -1)
    w3_f = w3.astype(jnp.float32).reshape(1, -1)   # (1, 64) row for the VPU path
    b3_f = b3.astype(jnp.float32).reshape(1, 1)

    h1_dim = w1_c.shape[1]   # 128
    h2_dim = w2_c.shape[1]   # 64

    const = lambda shape: pl.BlockSpec(shape, lambda i: (0, 0))   # resident in VMEM

    out = pl.pallas_call(
        _discriminator_kernel,
        out_shape=jax.ShapeDtypeStruct((b_pad, 128), jnp.float32),
        grid=(n_tiles,),
        in_specs=[
            pl.BlockSpec((bt, d_pad), lambda i: (i, 0)),   # x: streamed per batch tile
            const((d_pad, h1_dim)),
            const((1, h1_dim)),
            const((h1_dim, h2_dim)),
            const((1, h2_dim)),
            const((1, h2_dim)),
            const((1, 1)),
        ],
        out_specs=pl.BlockSpec((bt, 128), lambda i: (i, 0)),
        compiler_params=pltpu.CompilerParams(
            dimension_semantics=("parallel",),       # shard tiles across TCs (v7x)
            vmem_limit_bytes=32 * 1024 * 1024,       # ample headroom on v5e/v6e/v7x
        ),
    )(x_c, w1_c, b1_f, w2_c, b2_f, w3_f, b3_f)

    return out[:B, :1]


def init_params(key, input_dim):
    """Deterministic init mirroring PyTorch Linear shapes (weights stored transposed)."""
    ks = jax.random.split(key, 6)

    def linear(kw, kb, fan_in, fan_out):
        bound = 1.0 / jnp.sqrt(jnp.float32(fan_in))
        w = jax.random.uniform(kw, (fan_in, fan_out), jnp.float32, -bound, bound)
        b = jax.random.uniform(kb, (fan_out,), jnp.float32, -bound, bound)
        return w, b

    w1, b1 = linear(ks[0], ks[1], input_dim, 128)
    w2, b2 = linear(ks[2], ks[3], 128, 64)
    w3, b3 = linear(ks[4], ks[5], 64, 1)
    return {"w1": w1, "b1": b1, "w2": w2, "b2": b2, "w3": w3, "b3": b3}


if __name__ == "__main__":
    key = jax.random.PRNGKey(0)
    k_x, k_p = jax.random.split(key)

    B, input_dim = 64, 32
    x = jax.random.normal(k_x, (B, input_dim), dtype=jnp.float32)
    params = init_params(k_p, input_dim)

    # Small batch tile so the test exercises multiple pipelined grid steps (grid=(2,)).
    fwd = jax.jit(functools.partial(discriminator_forward, b_tile=32))
    out = jax.block_until_ready(fwd(x, params))

    # Reference replicating the kernel's dtype policy (bf16 matmuls, f32 accumulation).
    cd = jnp.bfloat16
    h1 = jnp.maximum(
        jnp.dot(x.astype(cd), params["w1"].astype(cd),
                preferred_element_type=jnp.float32) + params["b1"], 0.0)
    h2 = jnp.maximum(
        jnp.dot(h1.astype(cd), params["w2"].astype(cd),
                preferred_element_type=jnp.float32) + params["b2"], 0.0)
    logit = h2 @ params["w3"] + params["b3"]
    ref = jax.nn.sigmoid(logit).reshape(B, 1)

    assert out.shape == (B, 1)
    assert jnp.allclose(out, ref, atol=1e-4, rtol=1e-4), "mismatch vs reference"

    print("KERNEL_OK")
</pallas_src>

<mosaic_0001>
module attributes {stable_mosaic.version = 11 : i64} {
  func.func @_discriminator_kernel(%arg0: i32, %arg1: memref<32x128xbf16, #tpu.memory_space<vmem>>, %arg2: memref<128x128xbf16, #tpu.memory_space<vmem>>, %arg3: memref<1x128xf32, #tpu.memory_space<vmem>>, %arg4: memref<128x64xbf16, #tpu.memory_space<vmem>>, %arg5: memref<1x64xf32, #tpu.memory_space<vmem>>, %arg6: memref<1x64xf32, #tpu.memory_space<vmem>>, %arg7: memref<1x1xf32, #tpu.memory_space<vmem>>, %arg8: memref<32x128xf32, #tpu.memory_space<vmem>>) attributes {dimension_semantics = [#tpu.dimension_semantics<parallel>], iteration_bounds = array<i64: 2>, scalar_prefetch = 0 : i64, scratch_operands = 0 : i64, tpu.core_type = #tpu.core_type<tc>, window_params = [{transform_indices = @transform_0, window_bounds = array<i64: 32, 128>}, {pipeline_mode = #tpu.pipeline_mode<synchronous>, transform_indices = @transform_1, window_bounds = array<i64: 128, 128>}, {pipeline_mode = #tpu.pipeline_mode<synchronous>, transform_indices = @transform_2, window_bounds = array<i64: 1, 128>}, {pipeline_mode = #tpu.pipeline_mode<synchronous>, transform_indices = @transform_3, window_bounds = array<i64: 128, 64>}, {pipeline_mode = #tpu.pipeline_mode<synchronous>, transform_indices = @transform_4, window_bounds = array<i64: 1, 64>}, {pipeline_mode = #tpu.pipeline_mode<synchronous>, transform_indices = @transform_5, window_bounds = array<i64: 1, 64>}, {pipeline_mode = #tpu.pipeline_mode<synchronous>, transform_indices = @transform_6, window_bounds = array<i64: 1, 1>}, {transform_indices = @transform_7, window_bounds = array<i64: 32, 128>}]} {
    %c0 = arith.constant 0 : index
    %c0_0 = arith.constant 0 : index
    %0 = vector.load %arg1[%c0, %c0_0] : memref<32x128xbf16, #tpu.memory_space<vmem>>, vector<32x128xbf16>
    %c0_1 = arith.constant 0 : index
    %c0_2 = arith.constant 0 : index
    %1 = vector.load %arg2[%c0_1, %c0_2] : memref<128x128xbf16, #tpu.memory_space<vmem>>, vector<128x128xbf16>
    %cst = arith.constant dense<0.000000e+00> : vector<32x128xf32>
    %2 = tpu.matmul %0, %1, %cst {dimension_numbers = #tpu.dot_dimension_numbers<[1], [0], [0], [1], [0, 0, 1, 1], [], []>} : vector<32x128xbf16>, vector<128x128xbf16>, vector<32x128xf32> -> vector<32x128xf32>
    %c0_3 = arith.constant 0 : index
    %c0_4 = arith.constant 0 : index
    %3 = vector.load %arg3[%c0_3, %c0_4] : memref<1x128xf32, #tpu.memory_space<vmem>>, vector<1x128xf32>
    %4 = vector.broadcast %3 : vector<1x128xf32> to vector<32x128xf32>
    %5 = arith.addf %2, %4 : vector<32x128xf32>
    %cst_5 = arith.constant 0.000000e+00 : f32
    %6 = vector.broadcast %cst_5 : f32 to vector<32x128xf32>
    %7 = arith.maximumf %5, %6 : vector<32x128xf32>
    %8 = arith.truncf %7 : vector<32x128xf32> to vector<32x128xbf16>
    %c0_6 = arith.constant 0 : index
    %c0_7 = arith.constant 0 : index
    %9 = vector.load %arg4[%c0_6, %c0_7] : memref<128x64xbf16, #tpu.memory_space<vmem>>, vector<128x64xbf16>
    %cst_8 = arith.constant dense<0.000000e+00> : vector<32x64xf32>
    %10 = tpu.matmul %8, %9, %cst_8 {dimension_numbers = #tpu.dot_dimension_numbers<[1], [0], [0], [1], [0, 0, 1, 1], [], []>} : vector<32x128xbf16>, vector<128x64xbf16>, vector<32x64xf32> -> vector<32x64xf32>
    %c0_9 = arith.constant 0 : index
    %c0_10 = arith.constant 0 : index
    %11 = vector.load %arg5[%c0_9, %c0_10] : memref<1x64xf32, #tpu.memory_space<vmem>>, vector<1x64xf32>
    %12 = vector.broadcast %11 : vector<1x64xf32> to vector<32x64xf32>
    %13 = arith.addf %10, %12 : vector<32x64xf32>
    %cst_11 = arith.constant 0.000000e+00 : f32
    %14 = vector.broadcast %cst_11 : f32 to vector<32x64xf32>
    %15 = arith.maximumf %13, %14 : vector<32x64xf32>
    %c0_12 = arith.constant 0 : index
    %c0_13 = arith.constant 0 : index
    %16 = vector.load %arg6[%c0_12, %c0_13] : memref<1x64xf32, #tpu.memory_space<vmem>>, vector<1x64xf32>
    %17 = vector.broadcast %16 : vector<1x64xf32> to vector<32x64xf32>
    %18 = arith.mulf %15, %17 : vector<32x64xf32>
    %cst_14 = arith.constant dense<0.000000e+00> : vector<32xf32>
    %19 = vector.multi_reduction <add>, %18, %cst_14 [1] : vector<32x64xf32> to vector<32xf32>
    %20 = vector.shape_cast %19 : vector<32xf32> to vector<32x1xf32>
    %c0_15 = arith.constant 0 : index
    %c0_16 = arith.constant 0 : index
    %21 = vector.load %arg7[%c0_15, %c0_16] : memref<1x1xf32, #tpu.memory_space<vmem>>, vector<1x1xf32>
    %22 = vector.broadcast %21 : vector<1x1xf32> to vector<32x1xf32>
    %23 = arith.addf %20, %22 : vector<32x1xf32>
    %cst_17 = arith.constant -3.000000e+01 : f32
    %cst_18 = arith.constant 3.000000e+01 : f32
    %24 = vector.broadcast %cst_17 : f32 to vector<32x1xf32>
    %25 = arith.maximumf %24, %23 : vector<32x1xf32>
    %26 = vector.broadcast %cst_18 : f32 to vector<32x1xf32>
    %27 = arith.minimumf %26, %25 : vector<32x1xf32>
    %cst_19 = arith.constant 0.000000e+00 : f32
    %28 = vector.broadcast %cst_19 : f32 to vector<32x1xf32>
    %29 = arith.subf %28, %27 : vector<32x1xf32>
    %30 = math.exp %29 : vector<32x1xf32>
    %cst_20 = arith.constant 1.000000e+00 : f32
    %31 = vector.broadcast %cst_20 : f32 to vector<32x1xf32>
    %32 = arith.addf %31, %30 : vector<32x1xf32>
    %33 = tpu.reciprocal %32 {approx = true} : vector<32x1xf32> -> vector<32x1xf32>
    %34 = arith.mulf %32, %33 : vector<32x1xf32>
    %cst_21 = arith.constant 2.000000e+00 : f32
    %35 = vector.broadcast %cst_21 : f32 to vector<32x1xf32>
    %36 = arith.subf %35, %34 : vector<32x1xf32>
    %37 = arith.mulf %33, %36 : vector<32x1xf32>
    %38 = vector.shape_cast %37 : vector<32x1xf32> to vector<32x1xf32>
    %39 = vector.broadcast %38 : vector<32x1xf32> to vector<32x128xf32>
    %c0_22 = arith.constant 0 : index
    %c0_23 = arith.constant 0 : index
    %40 = vector.load %arg8[%c0_22, %c0_23] : memref<32x128xf32, #tpu.memory_space<vmem>>, vector<32x128xf32>
    tpu.vector_store %arg8[%c0_22, %c0_23], %39 {strides = array<i32>} : memref<32x128xf32, #tpu.memory_space<vmem>>, vector<32x128xf32>,
    return
  }
  func.func @transform_0(%arg0: i32) -> (i32, i32) {
    %c0_i32 = arith.constant 0 : i32
    %c0_i32_0 = arith.constant 0 : i32
    return %arg0, %c0_i32 : i32, i32
  }
  func.func @transform_1(%arg0: i32) -> (i32, i32) {
    %c0_i32 = arith.constant 0 : i32
    %c0_i32_0 = arith.constant 0 : i32
    %c0_i32_1 = arith.constant 0 : i32
    return %c0_i32, %c0_i32_0 : i32, i32
  }
  func.func @transform_2(%arg0: i32) -> (i32, i32) {
    %c0_i32 = arith.constant 0 : i32
    %c0_i32_0 = arith.constant 0 : i32
    %c0_i32_1 = arith.constant 0 : i32
    return %c0_i32, %c0_i32_0 : i32, i32
  }
  func.func @transform_3(%arg0: i32) -> (i32, i32) {
    %c0_i32 = arith.constant 0 : i32
    %c0_i32_0 = arith.constant 0 : i32
    %c0_i32_1 = arith.constant 0 : i32
    return %c0_i32, %c0_i32_0 : i32, i32
  }
  func.func @transform_4(%arg0: i32) -> (i32, i32) {
    %c0_i32 = arith.constant 0 : i32
    %c0_i32_0 = arith.constant 0 : i32
    %c0_i32_1 = arith.constant 0 : i32
    return %c0_i32, %c0_i32_0 : i32, i32
  }
  func.func @transform_5(%arg0: i32) -> (i32, i32) {
    %c0_i32 = arith.constant 0 : i32
    %c0_i32_0 = arith.constant 0 : i32
    %c0_i32_1 = arith.constant 0 : i32
    return %c0_i32, %c0_i32_0 : i32, i32
  }
  func.func @transform_6(%arg0: i32) -> (i32, i32) {
    %c0_i32 = arith.constant 0 : i32
    %c0_i32_0 = arith.constant 0 : i32
    %c0_i32_1 = arith.constant 0 : i32
    return %c0_i32, %c0_i32_0 : i32, i32
  }
  func.func @transform_7(%arg0: i32) -> (i32, i32) {
    %c0_i32 = arith.constant 0 : i32
    %c0_i32_0 = arith.constant 0 : i32
    return %arg0, %c0_i32 : i32, i32
  }
}

</mosaic_0001>

<llo_original>
// kernel: discriminator_forward.1
$region0: #{discriminator_forward.1}
  #allocation0 [shape = 'u32[]', space=smem, size = 0x4, offset = 0x4, fixed_abs, tag = 'smem constant byte address 0x4 - core index']
  #allocation1 [shape = 'u32[144,128]{1,0:T(1,128)}', space=vmem, size = 0x12000, scoped, tag = 'internal scratch']
  #allocation2 [shape = 'f32[1,1]{1,0:T(1,128)S(1)}', space=vmem, size = 0x200, scoped, tag = 'scoped memory for discriminator_forward.1']
  %s0 = inlined_call_operand.vmem [shape: bf16[64,128], index: 0, kind: input, shape index: {}]
  %s1 = inlined_call_operand.vmem [shape: bf16[128,128], index: 1, kind: input, shape index: {}]
  %s2 = inlined_call_operand.vmem [shape: f32[1,128], index: 2, kind: input, shape index: {}]
  %s3 = inlined_call_operand.vmem [shape: bf16[128,64], index: 3, kind: input, shape index: {}]
  %s4 = inlined_call_operand.vmem [shape: f32[1,64], index: 4, kind: input, shape index: {}]
  %s5 = inlined_call_operand.vmem [shape: f32[1,64], index: 5, kind: input, shape index: {}]
  %s6 = inlined_call_operand.<no memory space> [shape: f32[1,1], index: 6, kind: input, shape index: {}]
  %s7 = inlined_call_operand.vmem [shape: f32[64,128], index: 7, kind: output, shape index: {}]
  %s8 = sld [smem:[#allocation0]]
  $region61: #{discriminator_forward.1} parent=0
    _
  %s10 = ssub.s32 1, %s8
  %s11 = scalar_select 0, %s10, %s8
  %v12 = vstv %s6
  %13 = vst [vmem:[#allocation2] sm:$0x1] %v12
  loop: start=0, step=1, limit=4
  $region2: #{discriminator_forward.1} parent=0 // loop_pre_header
    _
  $region3: #{discriminator_forward.1} parent=0 // loop_header
    %s15 = sphi 0, %s19
    %p16 = scmp.ge.s32.totalorder %s15, 4
    %s25 = sphi 0, %s27
    %s28 = sphi 0, %s25
    %s29 = sphi 0, %s28
    %s45 = sphi 0, %s29
    %s49 = sphi 0, %s49
    %s51 = sphi 0, %s49
    %s52 = sphi 0, %s51
    %s66 = sphi 0, %s52
    %s70 = sphi 0, %s70
    %s72 = sphi 0, %s70
    %s73 = sphi 0, %s72
    %s87 = sphi 0, %s73
    %s91 = sphi 0, %s91
    %s93 = sphi 0, %s91
    %s94 = sphi 0, %s93
    %s108 = sphi 0, %s94
    %s112 = sphi 0, %s112
    %s114 = sphi 0, %s112
    %s115 = sphi 0, %s114
    %s129 = sphi 0, %s115
    %s133 = sphi 0, %s133
    %s135 = sphi 0, %s133
    %s136 = sphi 0, %s135
    %s150 = sphi 0, %s136
    %s154 = sphi 0, %s154
    %s156 = sphi 0, %s154
    %s157 = sphi 0, %s156
    %s171 = sphi 0, %s157
    %s177 = sphi 0, %s179
    %s180 = sphi 0, %s177
    %s181 = sphi 0, %s180
    %s197 = sphi 0, %s181
  $region4: #{discriminator_forward.1} parent=0 // loop_header_branch
    %18 = sbr.rel (%p16) target = $region8
  $region5: #{discriminator_forward.1} parent=0 // loop_body
    %s20 = ssub.s32 %s15, 1
    %s21 = ssub.s32 %s15, 2
    %s22 = sadd.s32 %s15, 1
    %s23 = ssub.s32 %s15, %s22
    %p24 = scmp.eq.s32.totalorder %s23, 0
    %s26 = sadd.s32 %s25, 1
    %s27 = scalar_select %p24, %s25, %s26
    %p30 = pneg %p24
    %p31 = scmp.eq.s32.totalorder %s15, 1
    %p32 = por %p30, %p31
    %p33 = scmp.ne.s32.totalorder %s25, %s28
    %p34 = scmp.eq.s32.totalorder %s15, 0
    %p35 = por %p33, %p34
    %p36 = scmp.ne.s32.totalorder %s25, %s28
    %p37 = scmp.eq.s32.totalorder %s20, 1
    %p38 = por %p36, %p37
    %p39 = scmp.ne.s32.totalorder %s28, %s29
    %p40 = scmp.eq.s32.totalorder %s20, 0
    %p41 = por %p39, %p40
    %p42 = scmp.ne.s32.totalorder %s28, %s29
    %p43 = scmp.eq.s32.totalorder %s21, 1
    %p44 = por %p42, %p43
    %p46 = scmp.ne.s32.totalorder %s29, %s45
    %p47 = scmp.eq.s32.totalorder %s21, 0
    %p48 = por %p46, %p47
    %s50 = sadd.s32 %s49, 1
    %p53 = scmp.eq.s32.totalorder %s15, 1
    %p54 = scmp.ne.s32.totalorder %s49, %s51
    %p55 = scmp.eq.s32.totalorder %s15, 0
    %p56 = por %p54, %p55
    %p57 = scmp.ne.s32.totalorder %s49, %s51
    %p58 = scmp.eq.s32.totalorder %s20, 1
    %p59 = por %p57, %p58
    %p60 = scmp.ne.s32.totalorder %s51, %s52
    %p61 = scmp.eq.s32.totalorder %s20, 0
    %p62 = por %p60, %p61
    %p63 = scmp.ne.s32.totalorder %s51, %s52
    %p64 = scmp.eq.s32.totalorder %s21, 1
    %p65 = por %p63, %p64
    %p67 = scmp.ne.s32.totalorder %s52, %s66
    %p68 = scmp.eq.s32.totalorder %s21, 0
    %p69 = por %p67, %p68
    %s71 = sadd.s32 %s70, 1
    %p74 = scmp.eq.s32.totalorder %s15, 1
    %p75 = scmp.ne.s32.totalorder %s70, %s72
    %p76 = scmp.eq.s32.totalorder %s15, 0
    %p77 = por %p75, %p76
    %p78 = scmp.ne.s32.totalorder %s70, %s72
    %p79 = scmp.eq.s32.totalorder %s20, 1
    %p80 = por %p78, %p79
    %p81 = scmp.ne.s32.totalorder %s72, %s73
    %p82 = scmp.eq.s32.totalorder %s20, 0
    %p83 = por %p81, %p82
    %p84 = scmp.ne.s32.totalorder %s72, %s73
    %p85 = scmp.eq.s32.totalorder %s21, 1
    %p86 = por %p84, %p85
    %p88 = scmp.ne.s32.totalorder %s73, %s87
    %p89 = scmp.eq.s32.totalorder %s21, 0
    %p90 = por %p88, %p89
    %s92 = sadd.s32 %s91, 1
    %p95 = scmp.eq.s32.totalorder %s15, 1
    %p96 = scmp.ne.s32.totalorder %s91, %s93
    %p97 = scmp.eq.s32.totalorder %s15, 0
    %p98 = por %p96, %p97
    %p99 = scmp.ne.s32.totalorder %s91, %s93
    %p100 = scmp.eq.s32.totalorder %s20, 1
    %p101 = por %p99, %p100
    %p102 = scmp.ne.s32.totalorder %s93, %s94
    %p103 = scmp.eq.s32.totalorder %s20, 0
    %p104 = por %p102, %p103
    %p105 = scmp.ne.s32.totalorder %s93, %s94
    %p106 = scmp.eq.s32.totalorder %s21, 1
    %p107 = por %p105, %p106
    %p109 = scmp.ne.s32.totalorder %s94, %s108
    %p110 = scmp.eq.s32.totalorder %s21, 0
    %p111 = por %p109, %p110
    %s113 = sadd.s32 %s112, 1
    %p116 = scmp.eq.s32.totalorder %s15, 1
    %p117 = scmp.ne.s32.totalorder %s112, %s114
    %p118 = scmp.eq.s32.totalorder %s15, 0
    %p119 = por %p117, %p118
    %p120 = scmp.ne.s32.totalorder %s112, %s114
    %p121 = scmp.eq.s32.totalorder %s20, 1
    %p122 = por %p120, %p121
    %p123 = scmp.ne.s32.totalorder %s114, %s115
    %p124 = scmp.eq.s32.totalorder %s20, 0
    %p125 = por %p123, %p124
    %p126 = scmp.ne.s32.totalorder %s114, %s115
    %p127 = scmp.eq.s32.totalorder %s21, 1
    %p128 = por %p126, %p127
    %p130 = scmp.ne.s32.totalorder %s115, %s129
    %p131 = scmp.eq.s32.totalorder %s21, 0
    %p132 = por %p130, %p131
    %s134 = sadd.s32 %s133, 1
    %p137 = scmp.eq.s32.totalorder %s15, 1
    %p138 = scmp.ne.s32.totalorder %s133, %s135
    %p139 = scmp.eq.s32.totalorder %s15, 0
    %p140 = por %p138, %p139
    %p141 = scmp.ne.s32.totalorder %s133, %s135
    %p142 = scmp.eq.s32.totalorder %s20, 1
    %p143 = por %p141, %p142
    %p144 = scmp.ne.s32.totalorder %s135, %s136
    %p145 = scmp.eq.s32.totalorder %s20, 0
    %p146 = por %p144, %p145
    %p147 = scmp.ne.s32.totalorder %s135, %s136
    %p148 = scmp.eq.s32.totalorder %s21, 1
    %p149 = por %p147, %p148
    %p151 = scmp.ne.s32.totalorder %s136, %s150
    %p152 = scmp.eq.s32.totalorder %s21, 0
    %p153 = por %p151, %p152
    %s155 = sadd.s32 %s154, 1
    %p158 = scmp.eq.s32.totalorder %s15, 1
    %p159 = scmp.ne.s32.totalorder %s154, %s156
    %p160 = scmp.eq.s32.totalorder %s15, 0
    %p161 = por %p159, %p160
    %p162 = scmp.ne.s32.totalorder %s154, %s156
    %p163 = scmp.eq.s32.totalorder %s20, 1
    %p164 = por %p162, %p163
    %p165 = scmp.ne.s32.totalorder %s156, %s157
    %p166 = scmp.eq.s32.totalorder %s20, 0
    %p167 = por %p165, %p166
    %p168 = scmp.ne.s32.totalorder %s156, %s157
    %p169 = scmp.eq.s32.totalorder %s21, 1
    %p170 = por %p168, %p169
    %p172 = scmp.ne.s32.totalorder %s157, %s171
    %p173 = scmp.eq.s32.totalorder %s21, 0
    %p174 = por %p172, %p173
    %s175 = ssub.s32 %s15, %s22
    %p176 = scmp.eq.s32.totalorder %s175, 0
    %s178 = sadd.s32 %s177, 1
    %s179 = scalar_select %p176, %s177, %s178
    %p182 = pneg %p176
    %p183 = scmp.eq.s32.totalorder %s15, 1
    %p184 = por %p182, %p183
    %p185 = scmp.ne.s32.totalorder %s177, %s180
    %p186 = scmp.eq.s32.totalorder %s15, 0
    %p187 = por %p185, %p186
    %p188 = scmp.ne.s32.totalorder %s177, %s180
    %p189 = scmp.eq.s32.totalorder %s20, 1
    %p190 = por %p188, %p189
    %p191 = scmp.ne.s32.totalorder %s180, %s181
    %p192 = scmp.eq.s32.totalorder %s20, 0
    %p193 = por %p191, %p192
    %p194 = scmp.ne.s32.totalorder %s180, %s181
    %p195 = scmp.eq.s32.totalorder %s21, 1
    %p196 = por %p194, %p195
    %p198 = scmp.ne.s32.totalorder %s181, %s197
    %p199 = scmp.eq.s32.totalorder %s21, 0
    %p200 = por %p198, %p199
    %p201 = scmp.le.s32.totalorder 1, %s15
    %p202 = scmp.lt.s32.totalorder %s15, 3
    %p203 = pnand %p201, %p202
    %p204 = pneg %p203
    // Predicated region
    $region9: #{discriminator_forward.1} parent=5 // pred_check
      _
    $region10: #{discriminator_forward.1} parent=5 // pred_check_branch
      %206 = sbr.rel (%p203) target = $region12
    $region11: #{discriminator_forward.1} parent=5 // pred_region
      %s207 = ssub.s32 %s15, 1
      // Predicated region
      $region13: #{discriminator_forward.1} parent=11 // pred_check
        %p208 = pneg %p62
      $region14: #{discriminator_forward.1} parent=11 // pred_check_branch
        %210 = sbr.rel (%p208) target = $region16
      $region15: #{discriminator_forward.1} parent=11 // pred_region
        _
      $region16: #{discriminator_forward.1} parent=11 // pred_fallthru
        _
      // Predicated region
      $region17: #{discriminator_forward.1} parent=11 // pred_check
        %p211 = pneg %p83
      $region18: #{discriminator_forward.1} parent=11 // pred_check_branch
        %213 = sbr.rel (%p211) target = $region20
      $region19: #{discriminator_forward.1} parent=11 // pred_region
        _
      $region20: #{discriminator_forward.1} parent=11 // pred_fallthru
        _
      // Predicated region
      $region21: #{discriminator_forward.1} parent=11 // pred_check
        %p214 = pneg %p104
      $region22: #{discriminator_forward.1} parent=11 // pred_check_branch
        %216 = sbr.rel (%p214) target = $region24
      $region23: #{discriminator_forward.1} parent=11 // pred_region
        _
      $region24: #{discriminator_forward.1} parent=11 // pred_fallthru
        _
      // Predicated region
      $region25: #{discriminator_forward.1} parent=11 // pred_check
        %p217 = pneg %p125
      $region26: #{discriminator_forward.1} parent=11 // pred_check_branch
        %219 = sbr.rel (%p217) target = $region28
      $region27: #{discriminator_forward.1} parent=11 // pred_region
        _
      $region28: #{discriminator_forward.1} parent=11 // pred_fallthru
        _
      // Predicated region
      $region29: #{discriminator_forward.1} parent=11 // pred_check
        %p220 = pneg %p146
      $region30: #{discriminator_forward.1} parent=11 // pred_check_branch
        %222 = sbr.rel (%p220) target = $region32
      $region31: #{discriminator_forward.1} parent=11 // pred_region
        _
      $region32: #{discriminator_forward.1} parent=11 // pred_fallthru
        _
      // Predicated region
      $region33: #{discriminator_forward.1} parent=11 // pred_check
        %p223 = pneg %p167
      $region34: #{discriminator_forward.1} parent=11 // pred_check_branch
        %225 = sbr.rel (%p223) target = $region36
      $region35: #{discriminator_forward.1} parent=11 // pred_region
        _
      $region36: #{discriminator_forward.1} parent=11 // pred_fallthru
        _
    $region12: #{discriminator_forward.1} parent=5 // pred_fallthru
      _
    %p226 = scmp.lt.s32.totalorder %s15, 2
    // Predicated region
    $region37: #{discriminator_forward.1} parent=5 // pred_check
      %p227 = pneg %p226
    $region38: #{discriminator_forward.1} parent=5 // pred_check_branch
      %229 = sbr.rel (%p227) target = $region40
    $region39: #{discriminator_forward.1} parent=5 // pred_region
      // Predicated region
      $region41: #{discriminator_forward.1} parent=39 // pred_check
        %p230 = pneg %p35
      $region42: #{discriminator_forward.1} parent=39 // pred_check_branch
        %232 = sbr.rel (%p230) target = $region44
      $region43: #{discriminator_forward.1} parent=39 // pred_region
        %s233 = smul.u32 4, %s15
        %p234 = scmp.lt.s32.totalorder %s233, 7
        %s235 = scalar_select %p234, %s233, 7
        %s236 = smul.addr %s235, 4
        %s237 = scalar_lea.vmem %s0, %s236
        %s238 = smul.u32 4, %s15
      $region44: #{discriminator_forward.1} parent=39 // pred_fallthru
        _
    $region40: #{discriminator_forward.1} parent=5 // pred_fallthru
      _
    %p239 = scmp.le.s32.totalorder 1, %s15
    %p240 = scmp.lt.s32.totalorder %s15, 3
    %p241 = pnand %p239, %p240
    %p242 = pneg %p241
    // Predicated region
    $region45: #{discriminator_forward.1} parent=5 // pred_check
      _
    $region46: #{discriminator_forward.1} parent=5 // pred_check_branch
      %244 = sbr.rel (%p241) target = $region48
    $region47: #{discriminator_forward.1} parent=5 // pred_region
      %s245 = ssub.s32 %s15, 1
      %s246 = smul.u32 4, %s20
      %p247 = scmp.lt.s32.totalorder %s246, 7
      %s248 = scalar_select %p247, %s246, 7
      %s249 = smul.addr %s248, 4
      %s250 = scalar_lea.vmem %s0, %s249
      %p251 = pneg %p41
      %p252 = pneg %p38
      %p253 = pneg %p62
      %p254 = pneg %p59
      %p255 = pneg %p83
      %p256 = pneg %p80
      %p257 = pneg %p104
      %p258 = pneg %p101
      %p259 = pneg %p125
      %p260 = pneg %p122
      %p261 = pneg %p146
      %p262 = pneg %p143
      %p263 = pneg %p167
      %p264 = pneg %p164
      %p265 = pneg %p193
      %p266 = pneg %p190
      %s267 = smul.u32 4, %s20
      %p268 = scmp.lt.s32.totalorder %s267, 7
      %s269 = scalar_select %p268, %s267, 7
      %s270 = smul.addr %s269, 8
      %s271 = scalar_lea.vmem %s7, %s270
      %s272 = smul.u32 4, %s20
      %p273 = scmp.lt.s32.totalorder %s272, 7
      %s274 = scalar_select %p273, %s272, 7
      %s275 = smul.addr %s274, 4
      %s276 = scalar_lea.vmem %s0, %s275
      %s277 = smul.u32 4, %s20
      %s278 = smul.u32 4, %s20
      %p279 = scmp.lt.s32.totalorder %s278, 7
      %s280 = scalar_select %p279, %s278, 7
      %s281 = smul.addr %s280, 8
      %s282 = scalar_lea.vmem %s7, %s281
      %s283 = smul.u32 4, %s20
      %v285 = vld [vmem:[%s276] sm:$0xf]
      %v286 = vld [vmem:[%s276 + $0x4] sm:$0xf]
      %v287 = vld [vmem:[%s276 + $0x8] sm:$0xf]
      %v288 = vld [vmem:[%s276 + $0xc] sm:$0xf]
      %v289 = vld [vmem:[%s1] sm:$0xf]
      %v290 = vld [vmem:[%s1 + $0x4] sm:$0xf]
      %v291 = vld [vmem:[%s1 + $0x8] sm:$0xf]
      %v292 = vld [vmem:[%s1 + $0xc] sm:$0xf]
      %v293 = vld [vmem:[%s1 + $0x10] sm:$0xf]
      %v294 = vld [vmem:[%s1 + $0x14] sm:$0xf]
      %v295 = vld [vmem:[%s1 + $0x18] sm:$0xf]
      %v296 = vld [vmem:[%s1 + $0x1c] sm:$0xf]
      %v297 = vld [vmem:[%s1 + $0x20] sm:$0xf]
      %v298 = vld [vmem:[%s1 + $0x24] sm:$0xf]
      %v299 = vld [vmem:[%s1 + $0x28] sm:$0xf]
      %v300 = vld [vmem:[%s1 + $0x2c] sm:$0xf]
      %v301 = vld [vmem:[%s1 + $0x30] sm:$0xf]
      %v302 = vld [vmem:[%s1 + $0x34] sm:$0xf]
      %v303 = vld [vmem:[%s1 + $0x38] sm:$0xf]
      %v304 = vld [vmem:[%s1 + $0x3c] sm:$0xf]
      %v305 = vld [vmem:[%s2] sm:$0x1]
      %v307 = vlaneseq
      %v308 = vshrl.u32 %v307, 7
      %v309 = vsub.s32 0, %v308
      %v310 = vrot.slane %v305, %v309
      %v316 = vunpack.c.l.b16 %v285
      %v317 = vunpack.c.l.b16 %v286
      %v318 = vunpack.c.l.b16 %v287
      %v319 = vunpack.c.l.b16 %v288
      %v320 = vpack.c.b16 %v317, %v316
      %v321 = vpack.c.b16 %v319, %v318
      %v340 = vunpack.c.l.b16 %v289
      %v341 = vunpack.c.l.b16 %v290
      %v342 = vunpack.c.l.b16 %v291
      %v343 = vunpack.c.l.b16 %v292
      %v344 = vunpack.c.l.b16 %v293
      %v345 = vunpack.c.l.b16 %v294
      %v346 = vunpack.c.l.b16 %v295
      %v347 = vunpack.c.l.b16 %v296
      %v348 = vunpack.c.l.b16 %v297
      %v349 = vunpack.c.l.b16 %v298
      %v350 = vunpack.c.l.b16 %v299
      %v351 = vunpack.c.l.b16 %v300
      %v352 = vunpack.c.l.b16 %v301
      %v353 = vunpack.c.l.b16 %v302
      %v354 = vunpack.c.l.b16 %v303
      %v355 = vunpack.c.l.b16 %v304
      %v356 = vpack.c.b16 %v341, %v340
      %v357 = vpack.c.b16 %v343, %v342
      %v358 = vpack.c.b16 %v345, %v344
      %v359 = vpack.c.b16 %v347, %v346
      %v360 = vpack.c.b16 %v349, %v348
      %v361 = vpack.c.b16 %v351, %v350
      %v362 = vpack.c.b16 %v353, %v352
      %v363 = vpack.c.b16 %v355, %v354
      %372 = vmatprep.subr.bf16.mxu0 0
      %373 = vmatpush1.bf16.msra.mxu0 %v356
      %374 = vmatprep.subr.bf16.mxu0 0
      %375 = vmatpush1.bf16.msra.mxu0 %v357
      %376 = vmatprep.subr.bf16.mxu0 0
      %377 = vmatpush1.bf16.msra.mxu0 %v358
      %378 = vmatprep.subr.bf16.mxu0 0
      %379 = vmatpush1.bf16.msra.mxu0 %v359
      %380 = vmatprep.subr.bf16.mxu0 0
      %381 = vmatpush1.bf16.msra.mxu0 %v360
      %382 = vmatprep.subr.bf16.mxu0 0
      %383 = vmatpush1.bf16.msra.mxu0 %v361
      %384 = vmatprep.subr.bf16.mxu0 0
      %385 = vmatpush1.bf16.msra.mxu0 %v362
      %386 = vmatprep.subr.bf16.mxu0 0
      %387 = vmatpush1.bf16.msra.mxu0 %v363
      %388 = vmatprep.subr.bf16.mxu0 0
      %389 = vmatpush1.bf16.msra.mxu0 0
      %390 = vmatprep.subr.bf16.mxu0 0
      %391 = vmatpush1.bf16.msra.mxu0 0
      %392 = vmatprep.subr.bf16.mxu0 0
      %393 = vmatpush1.bf16.msra.mxu0 0
      %394 = vmatprep.subr.bf16.mxu0 0
      %395 = vmatpush1.bf16.msra.mxu0 0
      %396 = vmatprep.subr.bf16.mxu0 0
      %397 = vmatpush1.bf16.msra.mxu0 0
      %398 = vmatprep.subr.bf16.mxu0 0
      %399 = vmatpush1.bf16.msra.mxu0 0
      %400 = vmatprep.subr.bf16.mxu0 0
      %401 = vmatpush1.bf16.msra.mxu0 0
      %402 = vmatprep.subr.bf16.mxu0 0
      %403 = vmatpush1.bf16.msra.mxu0 0
      %404 = vmatprep.mubr.bf16.mxu0 0
      %405 = vmatmul.mubr.bf16.gmra.mrb[0].mxu0 %v320
      %v406 = vpop.f32.mrb[0].mxu0
      %v407 = vadd.f32 %v310, %v406
      %v408 = vpop.f32.mrb[0].mxu0
      %v409 = vpop.f32.mrb[0].mxu0
      %v410 = vadd.f32 %v310, %v409
      %v411 = vpop.f32.mrb[0].mxu0
      %412 = vmatprep.mubr.bf16.mxu0 0
      %413 = vmatmul.mubr.bf16.gmra.mrb[0].mxu0 %v321
      %v414 = vpop.f32.mrb[0].mxu0
      %v415 = vadd.f32 %v310, %v414
      %v416 = vpop.f32.mrb[0].mxu0
      %v417 = vpop.f32.mrb[0].mxu0
      %v418 = vadd.f32 %v310, %v417
      %v419 = vpop.f32.mrb[0].mxu0
      %420 = vdwg.mxu0
      %v421 = vmax.f32 %v407, 0.0
      %v422 = vmax.f32 %v410, 0.0
      %v423 = vmax.f32 %v415, 0.0
      %v424 = vmax.f32 %v418, 0.0
      %v425 = vpack.c.bf16 %v422, %v421
      %v426 = vpack.c.bf16 %v424, %v423
      %v427 = vld [vmem:[%s3] sm:$0xf]
      %v428 = vld [vmem:[%s3 + $0x4] sm:$0xf]
      %v429 = vld [vmem:[%s3 + $0x8] sm:$0xf]
      %v430 = vld [vmem:[%s3 + $0xc] sm:$0xf]
      %v431 = vld [vmem:[%s3 + $0x10] sm:$0xf]
      %v432 = vld [vmem:[%s3 + $0x14] sm:$0xf]
      %v433 = vld [vmem:[%s3 + $0x18] sm:$0xf]
      %v434 = vld [vmem:[%s3 + $0x1c] sm:$0xf]
      %v435 = vld [vmem:[%s3 + $0x20] sm:$0xf]
      %v436 = vld [vmem:[%s3 + $0x24] sm:$0xf]
      %v437 = vld [vmem:[%s3 + $0x28] sm:$0xf]
      %v438 = vld [vmem:[%s3 + $0x2c] sm:$0xf]
      %v439 = vld [vmem:[%s3 + $0x30] sm:$0xf]
      %v440 = vld [vmem:[%s3 + $0x34] sm:$0xf]
      %v441 = vld [vmem:[%s3 + $0x38] sm:$0xf]
      %v442 = vld [vmem:[%s3 + $0x3c] sm:$0xf]
      %v443 = vld [vmem:[%s4] sm:$0x1]
      %v445 = vlaneseq
      %v446 = vshrl.u32 %v445, 7
      %v447 = vsub.s32 0, %v446
      %v448 = vrot.slane %v443, %v447
      %v466 = vunpack.c.l.b16 %v427
      %v467 = vunpack.c.l.b16 %v428
      %v468 = vunpack.c.l.b16 %v429
      %v469 = vunpack.c.l.b16 %v430
      %v470 = vunpack.c.l.b16 %v431
      %v471 = vunpack.c.l.b16 %v432
      %v472 = vunpack.c.l.b16 %v433
      %v473 = vunpack.c.l.b16 %v434
      %v474 = vunpack.c.l.b16 %v435
      %v475 = vunpack.c.l.b16 %v436
      %v476 = vunpack.c.l.b16 %v437
      %v477 = vunpack.c.l.b16 %v438
      %v478 = vunpack.c.l.b16 %v439
      %v479 = vunpack.c.l.b16 %v440
      %v480 = vunpack.c.l.b16 %v441
      %v481 = vunpack.c.l.b16 %v442
      %v482 = vpack.c.b16 %v467, %v466
      %v483 = vpack.c.b16 %v469, %v468
      %v484 = vpack.c.b16 %v471, %v470
      %v485 = vpack.c.b16 %v473, %v472
      %v486 = vpack.c.b16 %v475, %v474
      %v487 = vpack.c.b16 %v477, %v476
      %v488 = vpack.c.b16 %v479, %v478
      %v489 = vpack.c.b16 %v481, %v480
      %498 = vmatprep.subr.bf16.mxu0 0
      %499 = vmatpush1.bf16.msra.mxu0 %v482
      %500 = vmatprep.subr.bf16.mxu0 0
      %501 = vmatpush1.bf16.msra.mxu0 %v483
      %502 = vmatprep.subr.bf16.mxu0 0
      %503 = vmatpush1.bf16.msra.mxu0 %v484
      %504 = vmatprep.subr.bf16.mxu0 0
      %505 = vmatpush1.bf16.msra.mxu0 %v485
      %506 = vmatprep.subr.bf16.mxu0 0
      %507 = vmatpush1.bf16.msra.mxu0 %v486
      %508 = vmatprep.subr.bf16.mxu0 0
      %509 = vmatpush1.bf16.msra.mxu0 %v487
      %510 = vmatprep.subr.bf16.mxu0 0
      %511 = vmatpush1.bf16.msra.mxu0 %v488
      %512 = vmatprep.subr.bf16.mxu0 0
      %513 = vmatpush1.bf16.msra.mxu0 %v489
      %514 = vmatprep.subr.bf16.mxu0 0
      %515 = vmatpush1.bf16.msra.mxu0 0
      %516 = vmatprep.subr.bf16.mxu0 0
      %517 = vmatpush1.bf16.msra.mxu0 0
      %518 = vmatprep.subr.bf16.mxu0 0
      %519 = vmatpush1.bf16.msra.mxu0 0
      %520 = vmatprep.subr.bf16.mxu0 0
      %521 = vmatpush1.bf16.msra.mxu0 0
      %522 = vmatprep.subr.bf16.mxu0 0
      %523 = vmatpush1.bf16.msra.mxu0 0
      %524 = vmatprep.subr.bf16.mxu0 0
      %525 = vmatpush1.bf16.msra.mxu0 0
      %526 = vmatprep.subr.bf16.mxu0 0
      %527 = vmatpush1.bf16.msra.mxu0 0
      %528 = vmatprep.subr.bf16.mxu0 0
      %529 = vmatpush1.bf16.msra.mxu0 0
      %530 = vmatprep.mubr.bf16.mxu0 0
      %531 = vmatmul.mubr.bf16.gmra.mrb[0].mxu0 %v425
      %v532 = vpop.f32.mrb[0].mxu0
      %v533 = vadd.f32 %v448, %v532
      %v534 = vpop.f32.mrb[0].mxu0
      %v535 = vpop.f32.mrb[0].mxu0
      %v536 = vadd.f32 %v448, %v535
      %v537 = vpop.f32.mrb[0].mxu0
      %538 = vmatprep.mubr.bf16.mxu0 0
      %539 = vmatmul.mubr.bf16.gmra.mrb[0].mxu0 %v426
      %v540 = vpop.f32.mrb[0].mxu0
      %v541 = vadd.f32 %v448, %v540
      %v542 = vpop.f32.mrb[0].mxu0
      %v543 = vpop.f32.mrb[0].mxu0
      %v544 = vadd.f32 %v448, %v543
      %v545 = vpop.f32.mrb[0].mxu0
      %546 = vdwg.mxu0
      %v547 = vmax.f32 %v533, 0.0
      %v548 = vmax.f32 %v536, 0.0
      %v549 = vmax.f32 %v541, 0.0
      %v550 = vmax.f32 %v544, 0.0
      %v551 = vld [vmem:[%s5] sm:$0x1]
      %v553 = vlaneseq
      %v554 = vshrl.u32 %v553, 7
      %v555 = vsub.s32 0, %v554
      %v556 = vrot.slane %v551, %v555
      %v558 = vmul.f32 %v547, %v556
      %v559 = vmul.f32 %v548, %v556
      %v560 = vmul.f32 %v549, %v556
      %v561 = vmul.f32 %v550, %v556
      %vm562 = vcmask 523264
      %v563 = vsel %vm562, %v558, 0.0
      %564 = vadd.xlane.f32.xlu0 %v563
      %v565 = vpop.xlane.xlu0 %564
      %v566 = vsel %vm562, %v559, 0.0
      %567 = vadd.xlane.f32.xlu0 %v566
      %v568 = vpop.xlane.xlu0 %567
      %v569 = vsel %vm562, %v560, 0.0
      %570 = vadd.xlane.f32.xlu0 %v569
      %v571 = vpop.xlane.xlu0 %570
      %v572 = vsel %vm562, %v561, 0.0
      %573 = vadd.xlane.f32.xlu0 %v572
      %v574 = vpop.xlane.xlu0 %573
      %v575 = vld [vmem:[#allocation2] sm:$0x1]
      %v577 = vlaneseq
      %v578 = vshrl.u32 %v577, 7
      %v579 = vsub.s32 0, %v578
      %v580 = vrot.slane %v575, %v579
      %v582 = vadd.f32 %v565, %v580
      %v583 = vadd.f32 %v568, %v580
      %v584 = vadd.f32 %v571, %v580
      %v585 = vadd.f32 %v574, %v580
      %v586 = vmax.f32 %v582, -30.0
      %v587 = vmax.f32 %v583, -30.0
      %v588 = vmax.f32 %v584, -30.0
      %v589 = vmax.f32 %v585, -30.0
      %v590 = vmin.f32 %v586, 30.0
      %v591 = vmin.f32 %v587, 30.0
      %v592 = vmin.f32 %v588, 30.0
      %v593 = vmin.f32 %v589, 30.0
      %v594 = vsub.f32 0.0, %v590
      %v595 = vsub.f32 0.0, %v591
      %v596 = vsub.f32 0.0, %v592
      %v597 = vsub.f32 0.0, %v593
      %v598 = vmul.f32 %v594, 1.442695
      %v599 = vpow.pop %v598
      %v600 = vmul.f32 %v595, 1.442695
      %v601 = vpow.pop %v600
      %v602 = vmul.f32 %v596, 1.442695
      %v603 = vpow.pop %v602
      %v604 = vmul.f32 %v597, 1.442695
      %v605 = vpow.pop %v604
      %v606 = vadd.f32 %v599, 1.0
      %v607 = vadd.f32 %v601, 1.0
      %v608 = vadd.f32 %v603, 1.0
      %v609 = vadd.f32 %v605, 1.0
      %v610 = vrcp.pop %v606
      %v611 = vrcp.pop %v607
      %v612 = vrcp.pop %v608
      %v613 = vrcp.pop %v609
      %v614 = vmul.f32 %v606, %v610
      %v615 = vmul.f32 %v607, %v611
      %v616 = vmul.f32 %v608, %v612
      %v617 = vmul.f32 %v609, %v613
      %v618 = vsub.f32 2.0, %v614
      %v619 = vsub.f32 2.0, %v615
      %v620 = vsub.f32 2.0, %v616
      %v621 = vsub.f32 2.0, %v617
      %v622 = vmul.f32 %v610, %v618
      %v623 = vmul.f32 %v611, %v619
      %v624 = vmul.f32 %v612, %v620
      %v625 = vmul.f32 %v613, %v621
      %627 = vset.pattern.permute.xlu0 0
      %628 = vperm.xlu0 %627, %v622
      %v629 = vpop.permute.xlu0 %628
      %632 = vset.pattern.permute.xlu0 0
      %633 = vperm.xlu0 %632, %v623
      %v634 = vpop.permute.xlu0 %633
      %637 = vset.pattern.permute.xlu0 0
      %638 = vperm.xlu0 %637, %v624
      %v639 = vpop.permute.xlu0 %638
      %642 = vset.pattern.permute.xlu0 0
      %643 = vperm.xlu0 %642, %v625
      %v644 = vpop.permute.xlu0 %643
      %646 = vst [vmem:[%s282] sm:$0xff] %v629
      %647 = vst [vmem:[%s282 + $0x8] sm:$0xff] %v634
      %648 = vst [vmem:[%s282 + $0x10] sm:$0xff] %v639
      %649 = vst [vmem:[%s282 + $0x18] sm:$0xff] %v644
      %s650 = smul.u32 4, %s20
      %p651 = scmp.lt.s32.totalorder %s650, 7
      %s652 = scalar_select %p651, %s650, 7
      %s653 = smul.addr %s652, 8
      %s654 = scalar_lea.vmem %s7, %s653
      // Predicated region
      $region49: #{discriminator_forward.1} parent=47 // pred_check
        %p655 = pneg %p190
      $region50: #{discriminator_forward.1} parent=47 // pred_check_branch
        %657 = sbr.rel (%p655) target = $region52
      $region51: #{discriminator_forward.1} parent=47 // pred_region
        %s658 = smul.u32 4, %s20
      $region52: #{discriminator_forward.1} parent=47 // pred_fallthru
        _
    $region48: #{discriminator_forward.1} parent=5 // pred_fallthru
      _
    %p659 = scmp.le.s32.totalorder 2, %s15
    // Predicated region
    $region53: #{discriminator_forward.1} parent=5 // pred_check
      %p660 = pneg %p659
    $region54: #{discriminator_forward.1} parent=5 // pred_check_branch
      %662 = sbr.rel (%p660) target = $region56
    $region55: #{discriminator_forward.1} parent=5 // pred_region
      %s663 = ssub.s32 %s15, 2
      // Predicated region
      $region57: #{discriminator_forward.1} parent=55 // pred_check
        %p664 = pneg %p196
      $region58: #{discriminator_forward.1} parent=55 // pred_check_branch
        %666 = sbr.rel (%p664) target = $region60
      $region59: #{discriminator_forward.1} parent=55 // pred_region
        %s667 = smul.u32 4, %s21
        %p668 = scmp.lt.s32.totalorder %s667, 7
        %s669 = scalar_select %p668, %s667, 7
        %s670 = smul.addr %s669, 8
        %s671 = scalar_lea.vmem %s7, %s670
      $region60: #{discriminator_forward.1} parent=55 // pred_fallthru
        _
    $region56: #{discriminator_forward.1} parent=5 // pred_fallthru
      _
  $region6: #{discriminator_forward.1} parent=0 // loop_footer
    %s19 = sadd.s32 1, %s15
  $region7: #{discriminator_forward.1} parent=0 // loop_footer_branch
    %14 = sbr.rel target = $region3
  $region8: #{discriminator_forward.1} parent=0 // loop_exit
    _

</llo_original>
